<compile_context>
chip_gen: v7x
topology: tpu7x:2x2x1
jax: 0.10.0
libtpu: 0.0.40
codegen_flags: <defaults>
</compile_context>

<pallas_src>
import functools
import math

import jax
import jax.numpy as jnp
from jax.experimental import pallas as pl
from jax.experimental.pallas import tpu as pltpu


_LANE = 128
_RESIDENT_WEIGHT_BYTES = 8 * 1024 * 1024    # keep whole bf16 weight in VMEM below this
_VMEM_LIMIT_BYTES = 48 * 1024 * 1024        # safe on v5e/v6e (128 MiB) and v7x (64 MiB)


def _round_up(x, m):
    return ((x + m - 1) // m) * m


def _pick_tile_m(m, cap=512):
    """Largest tile (<= cap, multiple of 16) whose M-padding waste is <= 12.5%."""
    for c in (512, 256, 128, 64, 32, 16):
        if c > cap:
            continue
        mp = _round_up(m, c)
        if mp - m <= mp // 8:
            return c
    return 16


def _pick_divisor_tile(total, preferred):
    """Largest multiple of 128 <= preferred that divides `total` (a 128-multiple)."""
    t = max(_LANE, (min(preferred, total) // _LANE) * _LANE)
    while total % t:
        t -= _LANE
    return t


def _dropout_multiplier(key, rate, shape):
    """Keep-mask already scaled by 1/(1-p); built outside the kernel.

    TODO(synk): an in-kernel pltpu.prng_* mask would avoid this extra HBM
    stream, but those primitives do not lower in interpret/CPU mode.
    """
    if rate >= 1.0:
        return jnp.zeros(shape, jnp.float32)
    keep = jax.random.bernoulli(key, 1.0 - rate, shape)
    return keep.astype(jnp.float32) * jnp.float32(1.0 / (1.0 - rate))


# ----------------------------------------------------------------------------- kernels


def _mlp_unit_kernel_resident(*refs, apply_relu, has_dropout):
    """grid = (M tiles,).  The whole (K, Np) weight block stays resident in VMEM."""
    if has_dropout:
        x_ref, w_ref, shift_ref, mult_ref, out_ref = refs
    else:
        x_ref, w_ref, shift_ref, out_ref = refs
        mult_ref = None

    acc = jnp.dot(x_ref[...], w_ref[...], preferred_element_type=jnp.float32)
    out = acc + shift_ref[...]
    if apply_relu:
        out = jnp.maximum(out, jnp.float32(0.0))
    if has_dropout:
        out = out * mult_ref[...]
    out_ref[...] = out.astype(out_ref.dtype)


def _mlp_unit_kernel_tiled(*refs, apply_relu, has_dropout):
    """grid = (M tiles, N tiles, K tiles).  Accumulates directly into out_ref."""
    if has_dropout:
        x_ref, w_ref, shift_ref, mult_ref, out_ref = refs
    else:
        x_ref, w_ref, shift_ref, out_ref = refs
        mult_ref = None

    # Program ids are read at the top level only (never inside pl.when bodies).
    k = pl.program_id(2)
    num_k = pl.num_programs(2)

    part = jnp.dot(x_ref[...], w_ref[...], preferred_element_type=jnp.float32)

    @pl.when(k == 0)
    def _():
        out_ref[...] = part

    @pl.when(k > 0)
    def _():
        out_ref[...] = out_ref[...] + part

    @pl.when(k == num_k - 1)
    def _():
        out = out_ref[...] + shift_ref[...]
        if apply_relu:
            out = jnp.maximum(out, jnp.float32(0.0))
        if has_dropout:
            out = out * mult_ref[...]
        out_ref[...] = out


# ----------------------------------------------------------------------------- forward


@functools.partial(
    jax.jit,
    static_argnames=("out_dim", "apply_relu", "dropout_rate", "force_tiled",
                     "tile_m", "tile_n", "tile_k"))
def mlp_unit_forward(x, w_folded, shift, dropout_key, *, out_dim, apply_relu,
                     dropout_rate=0.0, force_tiled=False,
                     tile_m=None, tile_n=None, tile_k=None):
    """Fused Linear (+folded BN) (+ReLU) (+Dropout) forward.

    x:        (M, K)  float
    w_folded: (K, Np) bfloat16 — transposed weight with the BN scale folded in,
                      N already padded to a multiple of 128
    shift:    (1, Np) float32 — folded bias/BN shift
    """
    M, K = x.shape
    Kw, Np = w_folded.shape
    assert K == Kw, (K, Kw)

    x_b = x.astype(jnp.bfloat16)
    has_dropout = dropout_rate > 0.0
    use_resident = (not force_tiled) and (w_folded.size * 2 <= _RESIDENT_WEIGHT_BYTES)

    if use_resident:
        # ---- single-pass path: weight resident in VMEM, grid over M only ----
        if tile_m is not None:
            tm = tile_m
            Mp = _round_up(M, tm)
        elif M <= 512:
            tm, Mp = M, M                          # one full-dim M block, no padding
        else:
            tm = _pick_tile_m(M)
            Mp = _round_up(M, tm)
        if Mp != M:
            x_b = jnp.pad(x_b, ((0, Mp - M), (0, 0)))

        grid = (Mp // tm,)
        in_specs = [
            pl.BlockSpec((tm, K), lambda i: (i, 0)),          # no K padding
            pl.BlockSpec((K, Np), lambda i: (0, 0)),          # resident weight
            pl.BlockSpec((1, Np), lambda i: (0, 0)),
        ]
        inputs = [x_b, w_folded, shift]
        if has_dropout:
            mult = _dropout_multiplier(dropout_key, dropout_rate, (Mp, Np))
            in_specs.append(pl.BlockSpec((tm, Np), lambda i: (i, 0)))
            inputs.append(mult)
        out_specs = pl.BlockSpec((tm, Np), lambda i: (i, 0))
        kernel = functools.partial(_mlp_unit_kernel_resident,
                                   apply_relu=apply_relu, has_dropout=has_dropout)
        dims = ("parallel",)
    else:
        # ---- tiled 3-D grid fallback for large weights ----
        tk = tile_k if tile_k is not None else 512
        tk = max(_LANE, min(_round_up(tk, _LANE), _round_up(K, _LANE)))
        Kp = _round_up(K, tk)
        tn = _pick_divisor_tile(Np, tile_n if tile_n is not None else 512)
        tm = tile_m if tile_m is not None else _pick_tile_m(M, cap=256)
        Mp = _round_up(M, tm)

        if (Mp, Kp) != (M, K):
            x_b = jnp.pad(x_b, ((0, Mp - M), (0, Kp - K)))
        w_p = w_folded if Kp == K else jnp.pad(w_folded, ((0, Kp - K), (0, 0)))

        grid = (Mp // tm, Np // tn, Kp // tk)
        in_specs = [
            pl.BlockSpec((tm, tk), lambda i, j, k: (i, k)),
            pl.BlockSpec((tk, tn), lambda i, j, k: (k, j)),
            pl.BlockSpec((1, tn), lambda i, j, k: (0, j)),
        ]
        inputs = [x_b, w_p, shift]
        if has_dropout:
            mult = _dropout_multiplier(dropout_key, dropout_rate, (Mp, Np))
            in_specs.append(pl.BlockSpec((tm, tn), lambda i, j, k: (i, j)))
            inputs.append(mult)
        out_specs = pl.BlockSpec((tm, tn), lambda i, j, k: (i, j))
        kernel = functools.partial(_mlp_unit_kernel_tiled,
                                   apply_relu=apply_relu, has_dropout=has_dropout)
        dims = ("parallel", "parallel", "arbitrary")

    out_p = pl.pallas_call(
        kernel,
        out_shape=jax.ShapeDtypeStruct((Mp, Np), jnp.float32),
        grid=grid,
        in_specs=in_specs,
        out_specs=out_specs,
        compiler_params=pltpu.CompilerParams(
            dimension_semantics=dims,
            vmem_limit_bytes=_VMEM_LIMIT_BYTES),
    )(*inputs)

    return out_p[:M, :out_dim]


# ----------------------------------------------------------------------------- module


class MlpUnitLayerPallas:
    """JAX/Pallas port of scarabs.mora.models.ctr_with_finalmlp.MlpUnitLayer."""

    def __init__(self, input_dim, output_dim, batch_norm, user_activation,
                 dropout_rates, key):
        self.input_dim = int(input_dim)
        self.output_dim = int(output_dim)
        self.batch_norm = bool(batch_norm)
        self.user_activation = bool(user_activation)
        self.dropout_rates = float(dropout_rates)
        self.eps = 1e-5

        # torch.nn.init.xavier_normal_(weight); zeros_(bias)
        std = math.sqrt(2.0 / (input_dim + output_dim))
        self.weight = jax.random.normal(key, (output_dim, input_dim), jnp.float32) * std
        self.bias = jnp.zeros((output_dim,), jnp.float32)

        if self.batch_norm:
            self.gamma = jnp.ones((output_dim,), jnp.float32)
            self.beta = jnp.zeros((output_dim,), jnp.float32)
            self.running_mean = jnp.zeros((output_dim,), jnp.float32)
            self.running_var = jnp.ones((output_dim,), jnp.float32)

        self.prepare()

    def prepare(self):
        """One-time fold: Linear bias + eval-mode BN -> (weight*scale, shift),
        transpose, pad N to a multiple of 128 (lane-dense stores), cast bf16."""
        N = self.output_dim
        Np = _round_up(N, _LANE)
        if self.batch_norm:
            g = self.gamma / jnp.sqrt(self.running_var + self.eps)
            shift = (self.bias - self.running_mean) * g + self.beta
        else:
            g = jnp.ones((N,), jnp.float32)
            shift = self.bias
        w_folded = self.weight.astype(jnp.float32).T * g[None, :]          # (K, N)
        self._w_folded = jnp.pad(w_folded, ((0, 0), (0, Np - N))).astype(jnp.bfloat16)
        self._shift = jnp.pad(shift.astype(jnp.float32), (0, Np - N)).reshape(1, Np)

    def __call__(self, x, *, train=False, dropout_key=None,
                 force_tiled=False, tile_m=None, tile_n=None, tile_k=None):
        # TODO(synk): training-mode BatchNorm (batch statistics + running-stat
        # updates) is not computed in-kernel; BN always uses running stats
        # (eval semantics).  Dropout uses jax.random, so masks do not bit-match
        # torch's RNG.
        drop = self.dropout_rates if (train and self.dropout_rates > 0.0) else 0.0
        if dropout_key is None:
            dropout_key = jax.random.PRNGKey(0)
        return mlp_unit_forward(
            x, self._w_folded, self._shift, dropout_key,
            out_dim=self.output_dim,
            apply_relu=self.user_activation,
            dropout_rate=drop,
            force_tiled=force_tiled, tile_m=tile_m, tile_n=tile_n, tile_k=tile_k)


# ----------------------------------------------------------------------------- references / test


def _reference_f32(layer, x):
    """Pure-f32 reference with torch eval-mode semantics (running-stat BN, no dropout)."""
    z = x @ layer.weight.T + layer.bias
    if layer.batch_norm:
        z = (z - layer.running_mean) / jnp.sqrt(layer.running_var + layer.eps)
        z = z * layer.gamma + layer.beta
    if layer.user_activation:
        z = jnp.maximum(z, 0.0)
    return z


def _reference_bf16(layer, x):
    """Reference that mirrors the kernel's bf16-matmul / folded-affine math."""
    z = jnp.dot(x.astype(jnp.bfloat16), layer._w_folded,
                preferred_element_type=jnp.float32) + layer._shift
    if layer.user_activation:
        z = jnp.maximum(z, 0.0)
    return z[:, :layer.output_dim]


if __name__ == "__main__":
    key = jax.random.PRNGKey(0)

    # --- Config A: Linear + BN + ReLU, non-trivial "trained" BN stats --------
    key, k_w, k_x, k_g, k_b, k_m, k_v = jax.random.split(key, 7)
    layer_a = MlpUnitLayerPallas(96, 64, batch_norm=True, user_activation=True,
                                 dropout_rates=0.2, key=k_w)
    layer_a.gamma = 1.0 + 0.1 * jax.random.normal(k_g, (64,), jnp.float32)
    layer_a.beta = 0.1 * jax.random.normal(k_b, (64,), jnp.float32)
    layer_a.running_mean = 0.1 * jax.random.normal(k_m, (64,), jnp.float32)
    layer_a.running_var = jnp.abs(1.0 + 0.1 * jax.random.normal(k_v, (64,), jnp.float32))
    layer_a.prepare()                              # re-fold after editing BN stats
    x_a = jax.random.normal(k_x, (16, 96), jnp.float32)

    out_a = jax.block_until_ready(layer_a(x_a))    # eval: dropout off
    assert out_a.shape == (16, 64) and out_a.dtype == jnp.float32
    assert jnp.allclose(out_a, _reference_bf16(layer_a, x_a), atol=2e-3, rtol=2e-3)
    assert jnp.allclose(out_a, _reference_f32(layer_a, x_a), atol=5e-2, rtol=5e-2)

    # --- Config B: plain Linear, odd shapes (no K/M padding, N padded) -------
    key, k_w2, k_x2 = jax.random.split(key, 3)
    layer_b = MlpUnitLayerPallas(40, 24, batch_norm=False, user_activation=False,
                                 dropout_rates=0.0, key=k_w2)
    x_b = jax.random.normal(k_x2, (5, 40), jnp.float32)
    out_b = jax.block_until_ready(layer_b(x_b))
    assert out_b.shape == (5, 24)
    assert jnp.allclose(out_b, _reference_bf16(layer_b, x_b), atol=2e-3, rtol=2e-3)
    assert jnp.allclose(out_b, _reference_f32(layer_b, x_b), atol=5e-2, rtol=5e-2)

    # --- Config C: dropout path (train=True) ---------------------------------
    out_c = jax.block_until_ready(
        layer_a(x_a, train=True, dropout_key=jax.random.PRNGKey(123)))
    assert out_c.shape == (16, 64)
    assert bool(jnp.all(jnp.isfinite(out_c)))
    # Kept entries must equal the eval output scaled by 1/(1-p) = 1.25.
    kept = out_c != 0
    assert jnp.allclose(jnp.where(kept, out_c, 0.0),
                        jnp.where(kept, out_a * 1.25, 0.0), atol=1e-3, rtol=1e-3)

    # --- Config D: large-weight fallback (tiled 3-D grid, multi-step M/N/K) --
    key, k_w3, k_x3 = jax.random.split(key, 3)
    layer_d = MlpUnitLayerPallas(200, 192, batch_norm=False, user_activation=True,
                                 dropout_rates=0.0, key=k_w3)
    x_d = jax.random.normal(k_x3, (24, 200), jnp.float32)
    out_d = jax.block_until_ready(
        layer_d(x_d, force_tiled=True, tile_m=16, tile_n=128, tile_k=128))
    assert out_d.shape == (24, 192)
    assert jnp.allclose(out_d, _reference_bf16(layer_d, x_d), atol=2e-3, rtol=2e-3)
    assert jnp.allclose(out_d, _reference_f32(layer_d, x_d), atol=5e-2, rtol=5e-2)

    print("KERNEL_OK")
</pallas_src>

<mosaic_0001>
module attributes {stable_mosaic.version = 11 : i64} {
  func.func @_mlp_unit_kernel_resident(%arg0: i32, %arg1: memref<16x96xbf16, #tpu.memory_space<vmem>>, %arg2: memref<96x128xbf16, #tpu.memory_space<vmem>>, %arg3: memref<1x128xf32, #tpu.memory_space<vmem>>, %arg4: memref<16x128xf32, #tpu.memory_space<vmem>>) attributes {dimension_semantics = [#tpu.dimension_semantics<parallel>], iteration_bounds = array<i64: 1>, scalar_prefetch = 0 : i64, scratch_operands = 0 : i64, tpu.core_type = #tpu.core_type<tc>, window_params = [{transform_indices = @transform_0, window_bounds = array<i64: 16, 96>}, {pipeline_mode = #tpu.pipeline_mode<synchronous>, transform_indices = @transform_1, window_bounds = array<i64: 96, 128>}, {pipeline_mode = #tpu.pipeline_mode<synchronous>, transform_indices = @transform_2, window_bounds = array<i64: 1, 128>}, {transform_indices = @transform_3, window_bounds = array<i64: 16, 128>}]} {
    %c0 = arith.constant 0 : index
    %c0_0 = arith.constant 0 : index
    %0 = vector.load %arg1[%c0, %c0_0] : memref<16x96xbf16, #tpu.memory_space<vmem>>, vector<16x96xbf16>
    %c0_1 = arith.constant 0 : index
    %c0_2 = arith.constant 0 : index
    %1 = vector.load %arg2[%c0_1, %c0_2] : memref<96x128xbf16, #tpu.memory_space<vmem>>, vector<96x128xbf16>
    %cst = arith.constant dense<0.000000e+00> : vector<16x128xf32>
    %2 = tpu.matmul %0, %1, %cst {dimension_numbers = #tpu.dot_dimension_numbers<[1], [0], [0], [1], [0, 0, 1, 1], [], []>} : vector<16x96xbf16>, vector<96x128xbf16>, vector<16x128xf32> -> vector<16x128xf32>
    %c0_3 = arith.constant 0 : index
    %c0_4 = arith.constant 0 : index
    %3 = vector.load %arg3[%c0_3, %c0_4] : memref<1x128xf32, #tpu.memory_space<vmem>>, vector<1x128xf32>
    %4 = vector.broadcast %3 : vector<1x128xf32> to vector<16x128xf32>
    %5 = arith.addf %2, %4 : vector<16x128xf32>
    %cst_5 = arith.constant 0.000000e+00 : f32
    %6 = vector.broadcast %cst_5 : f32 to vector<16x128xf32>
    %7 = arith.maximumf %5, %6 : vector<16x128xf32>
    %c0_6 = arith.constant 0 : index
    %c0_7 = arith.constant 0 : index
    %8 = vector.load %arg4[%c0_6, %c0_7] : memref<16x128xf32, #tpu.memory_space<vmem>>, vector<16x128xf32>
    tpu.vector_store %arg4[%c0_6, %c0_7], %7 {strides = array<i32>} : memref<16x128xf32, #tpu.memory_space<vmem>>, vector<16x128xf32>,
    return
  }
  func.func @transform_0(%arg0: i32) -> (i32, i32) {
    %c0_i32 = arith.constant 0 : i32
    %c0_i32_0 = arith.constant 0 : i32
    return %arg0, %c0_i32 : i32, i32
  }
  func.func @transform_1(%arg0: i32) -> (i32, i32) {
    %c0_i32 = arith.constant 0 : i32
    %c0_i32_0 = arith.constant 0 : i32
    %c0_i32_1 = arith.constant 0 : i32
    return %c0_i32, %c0_i32_0 : i32, i32
  }
  func.func @transform_2(%arg0: i32) -> (i32, i32) {
    %c0_i32 = arith.constant 0 : i32
    %c0_i32_0 = arith.constant 0 : i32
    %c0_i32_1 = arith.constant 0 : i32
    return %c0_i32, %c0_i32_0 : i32, i32
  }
  func.func @transform_3(%arg0: i32) -> (i32, i32) {
    %c0_i32 = arith.constant 0 : i32
    %c0_i32_0 = arith.constant 0 : i32
    return %arg0, %c0_i32 : i32, i32
  }
}

</mosaic_0001>

<llo_original>
// kernel: mlp_unit_forward.1
$region0: #{mlp_unit_forward.1}
  #allocation0 [shape = 'u32[]', space=smem, size = 0x4, offset = 0x4, fixed_abs, tag = 'smem constant byte address 0x4 - core index']
  #allocation1 [shape = 'u32[144,128]{1,0:T(1,128)}', space=vmem, size = 0x12000, scoped, tag = 'internal scratch']
  %s0 = inlined_call_operand.vmem [shape: bf16[16,96], index: 0, kind: input, shape index: {}]
  %s1 = inlined_call_operand.hbm [shape: bf16[96,128], index: 1, kind: input, shape index: {}]
  %s2 = inlined_call_operand.vmem [shape: f32[1,128], index: 2, kind: input, shape index: {}]
  %s3 = inlined_call_operand.hbm [shape: f32[16,128], index: 3, kind: output, shape index: {}]
  %s4 = sld [smem:[#allocation0]]
  $region26: #{mlp_unit_forward.1} parent=0
    _
  %s6 = ssub.s32 1, %s4
  %s7 = scalar_select 0, %s6, %s4
  $region1: #{mlp_unit_forward.1} parent=0
    #allocation2 [shape = 'u8[24576]{0}', space=vmem, size = 0x6000, scoped, tag = 'input window, operand 1, single buffered']
    #allocation3 [shape = 's32[1]{0}', space=sflag, size = 0x4, scoped, tag = 'scoped memory for mlp_unit_forward.1']
    #allocation4 [shape = 's32[1]{0}', space=sflag, size = 0x4, scoped, tag = 'scoped memory for mlp_unit_forward.1']
    #allocation5 [shape = 'u8[8192]{0}', space=vmem, size = 0x2000, scoped, tag = 'output window, operand 0, single buffered']
    %8 = vsyncpa [#allocation3], 0
    %9 = vsyncpa [#allocation4], 0
    // Predicated region
    $region2: #{mlp_unit_forward.1} parent=1 // pred_check
      _
    $region3: #{mlp_unit_forward.1} parent=1 // pred_check_branch
      %11 = sbr.rel (0) target = $region5
    $region4: #{mlp_unit_forward.1} parent=1 // pred_region
      _
    $region5: #{mlp_unit_forward.1} parent=1 // pred_fallthru
      _
    // Predicated region
    $region6: #{mlp_unit_forward.1} parent=1 // pred_check
      _
    $region7: #{mlp_unit_forward.1} parent=1 // pred_check_branch
      %13 = sbr.rel (0) target = $region9
    $region8: #{mlp_unit_forward.1} parent=1 // pred_region
      %s15 = ssub.s32 768, 768
      %16 = vsyncadd [#allocation3], %s15
      %s17 = sshll.u32 [#allocation2], 4
      %s18 = int_to_ptr.vmem [resolvable:$true] %s17
      %23 = dma.hbm_to_vmem [thread:$0]  %s1, 768, %s18, [#allocation3], 64, 64, 4
    $region9: #{mlp_unit_forward.1} parent=1 // pred_fallthru
      _
    // Predicated region
    $region10: #{mlp_unit_forward.1} parent=1 // pred_check
      _
    $region11: #{mlp_unit_forward.1} parent=1 // pred_check_branch
      %25 = sbr.rel (0) target = $region13
    $region12: #{mlp_unit_forward.1} parent=1 // pred_region
      _
    $region13: #{mlp_unit_forward.1} parent=1 // pred_fallthru
      _
    // Predicated region
    $region14: #{mlp_unit_forward.1} parent=1 // pred_check
      _
    $region15: #{mlp_unit_forward.1} parent=1 // pred_check_branch
      %27 = sbr.rel (0) target = $region17
    $region16: #{mlp_unit_forward.1} parent=1 // pred_region
      %28 = dma.done [#allocation3], 768
    $region17: #{mlp_unit_forward.1} parent=1 // pred_fallthru
      _
    %v30 = vld [vmem:[%s0] sm:$0xf]
    %v31 = vld [vmem:[%s0 + $0x4] sm:$0xf]
    %v32 = vld [vmem:[#allocation2] sm:$0xf]
    %v33 = vld [vmem:[#allocation2 + $0x4] sm:$0xf]
    %v34 = vld [vmem:[#allocation2 + $0x8] sm:$0xf]
    %v35 = vld [vmem:[#allocation2 + $0xc] sm:$0xf]
    %v36 = vld [vmem:[#allocation2 + $0x10] sm:$0xf]
    %v37 = vld [vmem:[#allocation2 + $0x14] sm:$0xf]
    %v38 = vld [vmem:[#allocation2 + $0x18] sm:$0xf]
    %v39 = vld [vmem:[#allocation2 + $0x1c] sm:$0xf]
    %v40 = vld [vmem:[#allocation2 + $0x20] sm:$0xf]
    %v41 = vld [vmem:[#allocation2 + $0x24] sm:$0xf]
    %v42 = vld [vmem:[#allocation2 + $0x28] sm:$0xf]
    %v43 = vld [vmem:[#allocation2 + $0x2c] sm:$0xf]
    %v44 = vld [vmem:[%s2] sm:$0x1]
    %v46 = vlaneseq
    %v47 = vshrl.u32 %v46, 7
    %v48 = vsub.s32 0, %v47
    %v49 = vrot.slane %v44, %v48
    %v53 = vunpack.c.l.b16 %v30
    %v54 = vunpack.c.l.b16 %v31
    %v55 = vpack.c.b16 %v54, %v53
    %v68 = vunpack.c.l.b16 %v32
    %v69 = vunpack.c.l.b16 %v33
    %v70 = vunpack.c.l.b16 %v34
    %v71 = vunpack.c.l.b16 %v35
    %v72 = vunpack.c.l.b16 %v36
    %v73 = vunpack.c.l.b16 %v37
    %v74 = vunpack.c.l.b16 %v38
    %v75 = vunpack.c.l.b16 %v39
    %v76 = vunpack.c.l.b16 %v40
    %v77 = vunpack.c.l.b16 %v41
    %v78 = vunpack.c.l.b16 %v42
    %v79 = vunpack.c.l.b16 %v43
    %v80 = vpack.c.b16 %v69, %v68
    %v81 = vpack.c.b16 %v71, %v70
    %v82 = vpack.c.b16 %v73, %v72
    %v83 = vpack.c.b16 %v75, %v74
    %v84 = vpack.c.b16 %v77, %v76
    %v85 = vpack.c.b16 %v79, %v78
    %vm92 = vcmask 785408
    %v94 = vsel %vm92, %v55, 0
    %96 = vmatprep.subr.bf16.mxu0 0
    %97 = vmatpush1.bf16.msra.mxu0 %v80
    %98 = vmatprep.subr.bf16.mxu0 0
    %99 = vmatpush1.bf16.msra.mxu0 %v81
    %100 = vmatprep.subr.bf16.mxu0 0
    %101 = vmatpush1.bf16.msra.mxu0 %v82
    %102 = vmatprep.subr.bf16.mxu0 0
    %103 = vmatpush1.bf16.msra.mxu0 %v83
    %104 = vmatprep.subr.bf16.mxu0 0
    %105 = vmatpush1.bf16.msra.mxu0 %v84
    %106 = vmatprep.subr.bf16.mxu0 0
    %107 = vmatpush1.bf16.msra.mxu0 %v85
    %108 = vmatprep.subr.bf16.mxu0 0
    %109 = vmatpush1.bf16.msra.mxu0 0
    %110 = vmatprep.subr.bf16.mxu0 0
    %111 = vmatpush1.bf16.msra.mxu0 0
    %112 = vmatprep.subr.bf16.mxu0 0
    %113 = vmatpush1.bf16.msra.mxu0 0
    %114 = vmatprep.subr.bf16.mxu0 0
    %115 = vmatpush1.bf16.msra.mxu0 0
    %116 = vmatprep.subr.bf16.mxu0 0
    %117 = vmatpush1.bf16.msra.mxu0 0
    %118 = vmatprep.subr.bf16.mxu0 0
    %119 = vmatpush1.bf16.msra.mxu0 0
    %120 = vmatprep.subr.bf16.mxu0 0
    %121 = vmatpush1.bf16.msra.mxu0 0
    %122 = vmatprep.subr.bf16.mxu0 0
    %123 = vmatpush1.bf16.msra.mxu0 0
    %124 = vmatprep.subr.bf16.mxu0 0
    %125 = vmatpush1.bf16.msra.mxu0 0
    %126 = vmatprep.subr.bf16.mxu0 0
    %127 = vmatpush1.bf16.msra.mxu0 0
    %128 = vmatprep.mubr.bf16.mxu0 0
    %129 = vmatmul.mubr.bf16.gmra.mrb[0].mxu0 %v94
    %v130 = vpop.f32.mrb[0].mxu0
    %v131 = vadd.f32 %v49, %v130
    %v132 = vpop.f32.mrb[0].mxu0
    %v133 = vpop.f32.mrb[0].mxu0
    %v134 = vadd.f32 %v49, %v133
    %v135 = vpop.f32.mrb[0].mxu0
    %136 = vdwg.mxu0
    %v137 = vmax.f32 %v131, 0.0
    %v138 = vmax.f32 %v134, 0.0
    %139 = vst [vmem:[#allocation5] sm:$0xff] %v137
    %140 = vst [vmem:[#allocation5 + $0x8] sm:$0xff] %v138
    // Predicated region
    $region18: #{mlp_unit_forward.1} parent=1 // pred_check
      _
    $region19: #{mlp_unit_forward.1} parent=1 // pred_check_branch
      %142 = sbr.rel (0) target = $region21
    $region20: #{mlp_unit_forward.1} parent=1 // pred_region
      %s144 = ssub.s32 256, 256
      %145 = vsyncadd [#allocation4], %s144
      %s146 = sshll.u32 [#allocation5], 4
      %s147 = int_to_ptr.vmem [resolvable:$true] %s146
      %152 = dma.vmem_to_hbm [thread:$0]  %s147, 256, %s3, [#allocation4], 128, 128, 8
    $region21: #{mlp_unit_forward.1} parent=1 // pred_fallthru
      _
    // Predicated region
    $region22: #{mlp_unit_forward.1} parent=1 // pred_check
      _
    $region23: #{mlp_unit_forward.1} parent=1 // pred_check_branch
      %154 = sbr.rel (0) target = $region25
    $region24: #{mlp_unit_forward.1} parent=1 // pred_region
      %155 = dma.done [#allocation4], 256
    $region25: #{mlp_unit_forward.1} parent=1 // pred_fallthru
      _
    %156 = vsyncpa [#allocation3], 1
    %157 = vsyncpa [#allocation4], 1

</llo_original>
